<compile_context>
chip_gen: v7x
topology: tpu7x:2x2x1
jax: 0.10.0
libtpu: 0.0.40
codegen_flags: <defaults>
</compile_context>

<pallas_src>
import functools
import math

import jax
import jax.numpy as jnp
from jax import lax
from jax.experimental import pallas as pl
from jax.experimental.pallas import tpu as pltpu


# ---------------------------------------------------------------------------
# Kernel 1: fused QKV projection   (M, Hin) @ (Hin, 3A) + b  ->  (M, 3A)
# ---------------------------------------------------------------------------
def _qkv_proj_kernel(x_ref, w_ref, b_ref, o_ref):
    # f32 activations cast to bf16 in-kernel (VPU) -> one HBM read of x, no
    # separate XLA cast pass.  bf16 x bf16 MXU matmul, f32 accumulate.
    x = x_ref[...].astype(jnp.bfloat16)
    acc = jnp.dot(x, w_ref[...], preferred_element_type=jnp.float32)
    o_ref[...] = (acc + b_ref[...]).astype(o_ref.dtype)


def _project_qkv(x, w_fused, b_fused):
    """x: (B, S, Hin) f32.  w_fused: (Hin, 3A) bf16.  b_fused: (1, 3A) f32.

    Returns fused Q|K|V activations of shape (B, S, 3A) in bf16 — a free
    reshape of the kernel's (M, 3A) output (no transpose pass)."""
    B, S, Hin = x.shape
    threeA = w_fused.shape[1]
    M = B * S
    xf = x.reshape(M, Hin)

    # Token-tile sizing: 512-row tiles (~85% of HBM roofline measured on v6e)
    # for large M; full 8-aligned slab for small demo shapes.
    if M >= 512:
        tm = 512
    elif M >= 256:
        tm = 256
    else:
        tm = ((M + 7) // 8) * 8
    Mp = ((M + tm - 1) // tm) * tm
    if Mp != M:
        xf = jnp.pad(xf, ((0, Mp - M), (0, 0)))

    # Explicit VMEM budget: resident fused weight + double-buffered x/out tiles.
    # (v5e's default scoped VMEM is only 16 MiB; make tm=512 safe there too.)
    vmem_need = (Hin * threeA * 2 + threeA * 4
                 + 2 * tm * Hin * 4 + 2 * tm * threeA * 2)
    vmem_limit = int(min(max(2 * vmem_need, 32 * 1024 * 1024), 64 * 1024 * 1024))

    out = pl.pallas_call(
        _qkv_proj_kernel,
        out_shape=jax.ShapeDtypeStruct((Mp, threeA), jnp.bfloat16),
        grid=(Mp // tm,),
        in_specs=[
            pl.BlockSpec((tm, Hin), lambda i: (i, 0)),       # token tile (f32)
            pl.BlockSpec((Hin, threeA), lambda i: (0, 0)),   # fused weight (resident)
            pl.BlockSpec((1, threeA), lambda i: (0, 0)),     # fused bias
        ],
        out_specs=pl.BlockSpec((tm, threeA), lambda i: (i, 0)),
        compiler_params=pltpu.CompilerParams(
            dimension_semantics=("parallel",),
            vmem_limit_bytes=vmem_limit),
    )(xf, w_fused, b_fused)

    if Mp != M:
        out = out[:M]
    return out.reshape(B, S, threeA)


# ---------------------------------------------------------------------------
# Kernel 2: both cross-attention directions, all heads, one batch per step.
#   qkv layout per stream: (S, 3A) with columns [Q | K | V], head-major.
# ---------------------------------------------------------------------------
def _bi_attn_kernel(qkv1_ref, qkv2_ref, m1_ref, m2_ref,
                    ctx1_ref, ctx2_ref, p1_ref, p2_ref,
                    *, num_heads, head_dim, scale):
    A = num_heads * head_dim
    qkv1 = qkv1_ref[...]                        # (S1, 3A) bf16 (visual stream)
    qkv2 = qkv2_ref[...]                        # (S2, 3A) bf16 (text stream)
    m1 = m1_ref[...].astype(jnp.float32)        # (1, S1) additive mask
    m2 = m2_ref[...].astype(jnp.float32)        # (1, S2) additive mask

    def one_direction(q_src, kv_src, mask, ctx_ref, p_ref):
        ctx_heads = []
        for h in range(num_heads):              # static unroll over heads
            lo = h * head_dim
            q = q_src[:, lo:lo + head_dim]                       # (Sq, d) bf16
            k = kv_src[:, A + lo:A + lo + head_dim]              # (Sk, d) bf16
            v = kv_src[:, 2 * A + lo:2 * A + lo + head_dim]      # (Sk, d) bf16
            # bf16 MXU matmul, f32 accumulate; contract on d (no transpose).
            s = lax.dot_general(q, k, (((1,), (1,)), ((), ())),
                                preferred_element_type=jnp.float32)   # (Sq, Sk)
            s = s * jnp.float32(scale) + mask
            mrow = jnp.max(s, axis=-1, keepdims=True)
            e = jnp.exp(s - mrow)
            l = jnp.sum(e, axis=-1, keepdims=True)
            # EUP reciprocal + VPU mul instead of a VPU divide.
            p = e * pl.reciprocal(l, approx=True)
            p_ref[h] = p.astype(p_ref.dtype)                     # bf16 probs
            ctx_heads.append(jnp.dot(p.astype(v.dtype), v,
                                     preferred_element_type=jnp.float32))
        # Single lane-dense (Sq, A) store in the final output layout.
        ctx_ref[...] = jnp.concatenate(ctx_heads, axis=-1).astype(ctx_ref.dtype)

    # Direction 1: text queries attend over visual keys/values.
    one_direction(qkv2, qkv1, m1, ctx1_ref, p1_ref)
    # Direction 2: visual queries attend over text keys/values.
    one_direction(qkv1, qkv2, m2, ctx2_ref, p2_ref)


def _bi_cross_attention(qkv1, qkv2, mask1, mask2, num_heads):
    """qkv1: (B,S1,3A) bf16, qkv2: (B,S2,3A) bf16, masks: (B,1,1,S*) f32."""
    B, S1, threeA = qkv1.shape
    S2 = qkv2.shape[1]
    A = threeA // 3
    d = A // num_heads
    scale = 1.0 / math.sqrt(d)

    # Per-step block bytes (double-buffered by the pipeline) + margin.
    step_bytes = 2 * ((S1 + S2) * threeA * 2 + (S1 + S2) * A * 2
                      + 2 * num_heads * S1 * S2 * 2 + (S1 + S2) * 4)
    vmem_limit = int(min(max(2 * step_bytes + (1 << 22), 32 << 20), 64 << 20))

    kern = functools.partial(_bi_attn_kernel, num_heads=num_heads,
                             head_dim=d, scale=scale)
    ctx1, ctx2, p1, p2 = pl.pallas_call(
        kern,
        out_shape=(jax.ShapeDtypeStruct((B, S2, A), jnp.bfloat16),
                   jax.ShapeDtypeStruct((B, S1, A), jnp.bfloat16),
                   jax.ShapeDtypeStruct((B, num_heads, S2, S1), jnp.bfloat16),
                   jax.ShapeDtypeStruct((B, num_heads, S1, S2), jnp.bfloat16)),
        grid=(B,),
        in_specs=[
            pl.BlockSpec((None, S1, threeA), lambda b: (b, 0, 0)),
            pl.BlockSpec((None, S2, threeA), lambda b: (b, 0, 0)),
            pl.BlockSpec((None, None, 1, S1), lambda b: (b, 0, 0, 0)),
            pl.BlockSpec((None, None, 1, S2), lambda b: (b, 0, 0, 0)),
        ],
        out_specs=(
            pl.BlockSpec((None, S2, A), lambda b: (b, 0, 0)),
            pl.BlockSpec((None, S1, A), lambda b: (b, 0, 0)),
            pl.BlockSpec((None, num_heads, S2, S1), lambda b: (b, 0, 0, 0)),
            pl.BlockSpec((None, num_heads, S1, S2), lambda b: (b, 0, 0, 0)),
        ),
        compiler_params=pltpu.CompilerParams(
            dimension_semantics=("parallel",),
            vmem_limit_bytes=vmem_limit),
    )(qkv1, qkv2, mask1, mask2)
    return ctx1, ctx2, p1, p2


# ---------------------------------------------------------------------------
# Parameter preparation (done ONCE, outside the forward path)
# ---------------------------------------------------------------------------
def prepare_bi_attention_params(params):
    def fuse(qw, qb, kw, kb, vw, vb):
        w = jnp.concatenate([qw.T, kw.T, vw.T], axis=1).astype(jnp.bfloat16)
        b = jnp.concatenate([qb, kb, vb]).reshape(1, -1).astype(jnp.float32)
        return w, b

    w1, b1 = fuse(params["query1_w"], params["query1_b"],
                  params["key1_w"], params["key1_b"],
                  params["value1_w"], params["value1_b"])
    w2, b2 = fuse(params["query2_w"], params["query2_b"],
                  params["key2_w"], params["key2_b"],
                  params["value2_w"], params["value2_b"])
    return {"w1": w1, "b1": b1, "w2": w2, "b2": b2}


# ---------------------------------------------------------------------------
# Full BertBiAttention forward
# ---------------------------------------------------------------------------
def bert_bi_attention(input_tensor1, attention_mask1,
                      input_tensor2, attention_mask2,
                      fused_params, num_heads):
    qkv1 = _project_qkv(input_tensor1, fused_params["w1"], fused_params["b1"])
    qkv2 = _project_qkv(input_tensor2, fused_params["w2"], fused_params["b2"])
    ctx1, ctx2, p1, p2 = _bi_cross_attention(
        qkv1, qkv2,
        attention_mask1.astype(jnp.float32),
        attention_mask2.astype(jnp.float32),
        num_heads)
    return ctx1, ctx2, (p1, p2)


# ---------------------------------------------------------------------------
# Pure-JAX f32 reference (mirrors the PyTorch module)
# ---------------------------------------------------------------------------
def _reference(x1, m1, x2, m2, params, num_heads):
    def proj(x, w, b):
        return x.astype(jnp.float32) @ w.T.astype(jnp.float32) + b

    def split(x):
        B, S, A = x.shape
        d = A // num_heads
        return x.reshape(B, S, num_heads, d).transpose(0, 2, 1, 3)

    q1 = split(proj(x1, params["query1_w"], params["query1_b"]))
    k1 = split(proj(x1, params["key1_w"], params["key1_b"]))
    v1 = split(proj(x1, params["value1_w"], params["value1_b"]))
    q2 = split(proj(x2, params["query2_w"], params["query2_b"]))
    k2 = split(proj(x2, params["key2_w"], params["key2_b"]))
    v2 = split(proj(x2, params["value2_w"], params["value2_b"]))

    d = q1.shape[-1]
    s1 = jnp.einsum("bhqd,bhkd->bhqk", q2, k1) / math.sqrt(d) + m1
    p1 = jax.nn.softmax(s1, axis=-1)
    c1 = jnp.einsum("bhqk,bhkd->bhqd", p1, v1)
    s2 = jnp.einsum("bhqd,bhkd->bhqk", q1, k2) / math.sqrt(d) + m2
    p2 = jax.nn.softmax(s2, axis=-1)
    c2 = jnp.einsum("bhqk,bhkd->bhqd", p2, v2)

    B = x1.shape[0]
    c1 = c1.transpose(0, 2, 1, 3).reshape(B, x2.shape[1], -1)
    c2 = c2.transpose(0, 2, 1, 3).reshape(B, x1.shape[1], -1)
    return c1, c2, (p1, p2)


if __name__ == "__main__":
    # Small, module-consistent shapes:
    #   batch=2, visual seq=16 (v_hidden=48), text seq=8 (t_hidden=32),
    #   bi_hidden_size (all_head_size)=32, bi_num_attention_heads=4 -> d=8.
    B, S1, S2 = 2, 16, 8
    V_HID, T_HID = 48, 32
    A, NH = 32, 4

    key = jax.random.PRNGKey(0)
    keys = jax.random.split(key, 16)

    def lin(kw, kb, out_dim, in_dim):
        return (jax.random.normal(kw, (out_dim, in_dim), jnp.float32) * 0.02,
                jax.random.normal(kb, (out_dim,), jnp.float32) * 0.02)

    params = {}
    params["query1_w"], params["query1_b"] = lin(keys[0], keys[1], A, V_HID)
    params["key1_w"], params["key1_b"] = lin(keys[2], keys[3], A, V_HID)
    params["value1_w"], params["value1_b"] = lin(keys[4], keys[5], A, V_HID)
    params["query2_w"], params["query2_b"] = lin(keys[6], keys[7], A, T_HID)
    params["key2_w"], params["key2_b"] = lin(keys[8], keys[9], A, T_HID)
    params["value2_w"], params["value2_b"] = lin(keys[10], keys[11], A, T_HID)

    input_tensor1 = jax.random.normal(keys[12], (B, S1, V_HID), jnp.float32)
    input_tensor2 = jax.random.normal(keys[13], (B, S2, T_HID), jnp.float32)

    # Standard BERT-style additive masks: 0 for keep, -10000 for masked.
    keep1 = jax.random.bernoulli(keys[14], 0.8, (B, 1, 1, S1))
    keep2 = jax.random.bernoulli(keys[15], 0.8, (B, 1, 1, S2))
    attention_mask1 = (1.0 - keep1.astype(jnp.float32)) * -10000.0
    attention_mask2 = (1.0 - keep2.astype(jnp.float32)) * -10000.0

    # Fused weights built once (hoisted out of the forward path).
    fused_params = prepare_bi_attention_params(params)

    ctx1, ctx2, (probs1, probs2) = bert_bi_attention(
        input_tensor1, attention_mask1, input_tensor2, attention_mask2,
        fused_params, NH)
    ctx1, ctx2, probs1, probs2 = jax.block_until_ready(
        (ctx1, ctx2, probs1, probs2))

    r_ctx1, r_ctx2, (r_p1, r_p2) = _reference(
        input_tensor1, attention_mask1, input_tensor2, attention_mask2,
        params, NH)

    assert ctx1.shape == (B, S2, A) and ctx2.shape == (B, S1, A)
    assert probs1.shape == (B, NH, S2, S1) and probs2.shape == (B, NH, S1, S2)
    # bf16 MXU inputs + bf16 outputs (probs/ctx) -> bf16-level tolerance.
    assert jnp.allclose(ctx1.astype(jnp.float32), r_ctx1, atol=3e-2, rtol=3e-2), "context1 mismatch"
    assert jnp.allclose(ctx2.astype(jnp.float32), r_ctx2, atol=3e-2, rtol=3e-2), "context2 mismatch"
    assert jnp.allclose(probs1.astype(jnp.float32), r_p1, atol=3e-2, rtol=3e-2), "probs1 mismatch"
    assert jnp.allclose(probs2.astype(jnp.float32), r_p2, atol=3e-2, rtol=3e-2), "probs2 mismatch"

    print("KERNEL_OK")
</pallas_src>

<mosaic_0001>
module attributes {stable_mosaic.version = 11 : i64} {
  func.func @_qkv_proj_kernel(%arg0: i32, %arg1: memref<32x48xf32, #tpu.memory_space<vmem>>, %arg2: memref<48x96xbf16, #tpu.memory_space<vmem>>, %arg3: memref<1x96xf32, #tpu.memory_space<vmem>>, %arg4: memref<32x96xbf16, #tpu.memory_space<vmem>>) attributes {dimension_semantics = [#tpu.dimension_semantics<parallel>], iteration_bounds = array<i64: 1>, scalar_prefetch = 0 : i64, scratch_operands = 0 : i64, tpu.core_type = #tpu.core_type<tc>, window_params = [{transform_indices = @transform_0, window_bounds = array<i64: 32, 48>}, {pipeline_mode = #tpu.pipeline_mode<synchronous>, transform_indices = @transform_1, window_bounds = array<i64: 48, 96>}, {pipeline_mode = #tpu.pipeline_mode<synchronous>, transform_indices = @transform_2, window_bounds = array<i64: 1, 96>}, {transform_indices = @transform_3, window_bounds = array<i64: 32, 96>}]} {
    %c0 = arith.constant 0 : index
    %c0_0 = arith.constant 0 : index
    %0 = vector.load %arg1[%c0, %c0_0] : memref<32x48xf32, #tpu.memory_space<vmem>>, vector<32x48xf32>
    %1 = arith.truncf %0 : vector<32x48xf32> to vector<32x48xbf16>
    %c0_1 = arith.constant 0 : index
    %c0_2 = arith.constant 0 : index
    %2 = vector.load %arg2[%c0_1, %c0_2] : memref<48x96xbf16, #tpu.memory_space<vmem>>, vector<48x96xbf16>
    %cst = arith.constant dense<0.000000e+00> : vector<32x96xf32>
    %3 = tpu.matmul %1, %2, %cst {dimension_numbers = #tpu.dot_dimension_numbers<[1], [0], [0], [1], [0, 0, 1, 1], [], []>} : vector<32x48xbf16>, vector<48x96xbf16>, vector<32x96xf32> -> vector<32x96xf32>
    %c0_3 = arith.constant 0 : index
    %c0_4 = arith.constant 0 : index
    %4 = vector.load %arg3[%c0_3, %c0_4] : memref<1x96xf32, #tpu.memory_space<vmem>>, vector<1x96xf32>
    %5 = vector.broadcast %4 : vector<1x96xf32> to vector<32x96xf32>
    %6 = arith.addf %3, %5 : vector<32x96xf32>
    %7 = arith.truncf %6 : vector<32x96xf32> to vector<32x96xbf16>
    %c0_5 = arith.constant 0 : index
    %c0_6 = arith.constant 0 : index
    %8 = vector.load %arg4[%c0_5, %c0_6] : memref<32x96xbf16, #tpu.memory_space<vmem>>, vector<32x96xbf16>
    tpu.vector_store %arg4[%c0_5, %c0_6], %7 {strides = array<i32>} : memref<32x96xbf16, #tpu.memory_space<vmem>>, vector<32x96xbf16>,
    return
  }
  func.func @transform_0(%arg0: i32) -> (i32, i32) {
    %c0_i32 = arith.constant 0 : i32
    %c0_i32_0 = arith.constant 0 : i32
    return %arg0, %c0_i32 : i32, i32
  }
  func.func @transform_1(%arg0: i32) -> (i32, i32) {
    %c0_i32 = arith.constant 0 : i32
    %c0_i32_0 = arith.constant 0 : i32
    %c0_i32_1 = arith.constant 0 : i32
    return %c0_i32, %c0_i32_0 : i32, i32
  }
  func.func @transform_2(%arg0: i32) -> (i32, i32) {
    %c0_i32 = arith.constant 0 : i32
    %c0_i32_0 = arith.constant 0 : i32
    %c0_i32_1 = arith.constant 0 : i32
    return %c0_i32, %c0_i32_0 : i32, i32
  }
  func.func @transform_3(%arg0: i32) -> (i32, i32) {
    %c0_i32 = arith.constant 0 : i32
    %c0_i32_0 = arith.constant 0 : i32
    return %arg0, %c0_i32 : i32, i32
  }
}

</mosaic_0001>

<llo_original>
// kernel: tpu_custom_call.1
$region0: #{tpu_custom_call.1}
  #allocation0 [shape = 'u32[]', space=smem, size = 0x4, offset = 0x4, fixed_abs, tag = 'smem constant byte address 0x4 - core index']
  #allocation1 [shape = 'u32[144,128]{1,0:T(1,128)}', space=vmem, size = 0x12000, scoped, tag = 'internal scratch']
  %s0 = inlined_call_operand.hbm [shape: f32[32,48], index: 0, kind: input, shape index: {}]
  %s1 = inlined_call_operand.hbm [shape: bf16[48,96], index: 1, kind: input, shape index: {}]
  %s2 = inlined_call_operand.vmem [shape: f32[1,96], index: 2, kind: input, shape index: {}]
  %s3 = inlined_call_operand.hbm [shape: bf16[32,96], index: 3, kind: output, shape index: {}]
  %s4 = sld [smem:[#allocation0]]
  $region30: #{tpu_custom_call.1} parent=0
    _
  %s6 = ssub.s32 1, %s4
  %s7 = scalar_select 0, %s6, %s4
  $region1: #{tpu_custom_call.1} parent=0
    #allocation2 [shape = 'u8[16384]{0}', space=vmem, size = 0x4000, scoped, tag = 'input window, operand 0, single buffered']
    #allocation3 [shape = 's32[1]{0}', space=sflag, size = 0x4, scoped, tag = 'scoped memory for tpu_custom_call.1']
    #allocation4 [shape = 's32[1]{0}', space=sflag, size = 0x4, scoped, tag = 'scoped memory for tpu_custom_call.1']
    #allocation5 [shape = 'u8[12288]{0}', space=vmem, size = 0x3000, scoped, tag = 'input window, operand 1, single buffered']
    #allocation6 [shape = 's32[1]{0}', space=sflag, size = 0x4, scoped, tag = 'scoped memory for tpu_custom_call.1']
    #allocation7 [shape = 'u8[8192]{0}', space=vmem, size = 0x2000, scoped, tag = 'output window, operand 0, single buffered']
    %8 = vsyncpa [#allocation3], 0
    %9 = vsyncpa [#allocation6], 0
    %10 = vsyncpa [#allocation4], 0
    // Predicated region
    $region2: #{tpu_custom_call.1} parent=1 // pred_check
      _
    $region3: #{tpu_custom_call.1} parent=1 // pred_check_branch
      %12 = sbr.rel (0) target = $region5
    $region4: #{tpu_custom_call.1} parent=1 // pred_region
      %s14 = ssub.s32 512, 512
      %15 = vsyncadd [#allocation3], %s14
      %s16 = sshll.u32 [#allocation2], 4
      %s17 = int_to_ptr.vmem [resolvable:$true] %s16
      %22 = dma.hbm_to_vmem [thread:$0]  %s0, 512, %s17, [#allocation3], 128, 128, 8
    $region5: #{tpu_custom_call.1} parent=1 // pred_fallthru
      _
    // Predicated region
    $region6: #{tpu_custom_call.1} parent=1 // pred_check
      _
    $region7: #{tpu_custom_call.1} parent=1 // pred_check_branch
      %24 = sbr.rel (0) target = $region9
    $region8: #{tpu_custom_call.1} parent=1 // pred_region
      %s26 = ssub.s32 384, 384
      %27 = vsyncadd [#allocation6], %s26
      %s28 = sshll.u32 [#allocation5], 4
      %s29 = int_to_ptr.vmem [resolvable:$true] %s28
      %34 = dma.hbm_to_vmem [thread:$0]  %s1, 384, %s29, [#allocation6], 64, 64, 4
    $region9: #{tpu_custom_call.1} parent=1 // pred_fallthru
      _
    // Predicated region
    $region10: #{tpu_custom_call.1} parent=1 // pred_check
      _
    $region11: #{tpu_custom_call.1} parent=1 // pred_check_branch
      %36 = sbr.rel (0) target = $region13
    $region12: #{tpu_custom_call.1} parent=1 // pred_region
      _
    $region13: #{tpu_custom_call.1} parent=1 // pred_fallthru
      _
    // Predicated region
    $region14: #{tpu_custom_call.1} parent=1 // pred_check
      _
    $region15: #{tpu_custom_call.1} parent=1 // pred_check_branch
      %38 = sbr.rel (0) target = $region17
    $region16: #{tpu_custom_call.1} parent=1 // pred_region
      %39 = dma.done [#allocation3], 512
    $region17: #{tpu_custom_call.1} parent=1 // pred_fallthru
      _
    // Predicated region
    $region18: #{tpu_custom_call.1} parent=1 // pred_check
      _
    $region19: #{tpu_custom_call.1} parent=1 // pred_check_branch
      %41 = sbr.rel (0) target = $region21
    $region20: #{tpu_custom_call.1} parent=1 // pred_region
      %42 = dma.done [#allocation6], 384
    $region21: #{tpu_custom_call.1} parent=1 // pred_fallthru
      _
    %v44 = vld [vmem:[#allocation2] sm:$0xff]
    %v45 = vld [vmem:[#allocation2 + $0x8] sm:$0xff]
    %v46 = vld [vmem:[#allocation2 + $0x10] sm:$0xff]
    %v47 = vld [vmem:[#allocation2 + $0x18] sm:$0xff]
    %v48 = vpack.c.bf16 %v45, %v44
    %v49 = vpack.c.bf16 %v47, %v46
    %v50 = vld [vmem:[#allocation5] sm:$0xf]
    %v51 = vld [vmem:[#allocation5 + $0x4] sm:$0xf]
    %v52 = vld [vmem:[#allocation5 + $0x8] sm:$0xf]
    %v53 = vld [vmem:[#allocation5 + $0xc] sm:$0xf]
    %v54 = vld [vmem:[#allocation5 + $0x10] sm:$0xf]
    %v55 = vld [vmem:[#allocation5 + $0x14] sm:$0xf]
    %v56 = vld [vmem:[%s2] sm:$0x1]
    %v58 = vlaneseq
    %v59 = vshrl.u32 %v58, 7
    %v60 = vsub.s32 0, %v59
    %v61 = vrot.slane %v56, %v60
    %v69 = vunpack.c.l.b16 %v50
    %v70 = vunpack.c.l.b16 %v51
    %v71 = vunpack.c.l.b16 %v52
    %v72 = vunpack.c.l.b16 %v53
    %v73 = vunpack.c.l.b16 %v54
    %v74 = vunpack.c.l.b16 %v55
    %v75 = vpack.c.b16 %v70, %v69
    %v76 = vpack.c.b16 %v72, %v71
    %v77 = vpack.c.b16 %v74, %v73
    %vm81 = vcmask 392192
    %v83 = vsel %vm81, %v48, 0
    %v86 = vsel %vm81, %v49, 0
    %88 = vmatprep.subr.bf16.mxu0 0
    %89 = vmatpush1.bf16.msra.mxu0 %v75
    %90 = vmatprep.subr.bf16.mxu0 0
    %91 = vmatpush1.bf16.msra.mxu0 %v76
    %92 = vmatprep.subr.bf16.mxu0 0
    %93 = vmatpush1.bf16.msra.mxu0 %v77
    %94 = vmatprep.subr.bf16.mxu0 0
    %95 = vmatpush1.bf16.msra.mxu0 0
    %96 = vmatprep.subr.bf16.mxu0 0
    %97 = vmatpush1.bf16.msra.mxu0 0
    %98 = vmatprep.subr.bf16.mxu0 0
    %99 = vmatpush1.bf16.msra.mxu0 0
    %100 = vmatprep.subr.bf16.mxu0 0
    %101 = vmatpush1.bf16.msra.mxu0 0
    %102 = vmatprep.subr.bf16.mxu0 0
    %103 = vmatpush1.bf16.msra.mxu0 0
    %104 = vmatprep.subr.bf16.mxu0 0
    %105 = vmatpush1.bf16.msra.mxu0 0
    %106 = vmatprep.subr.bf16.mxu0 0
    %107 = vmatpush1.bf16.msra.mxu0 0
    %108 = vmatprep.subr.bf16.mxu0 0
    %109 = vmatpush1.bf16.msra.mxu0 0
    %110 = vmatprep.subr.bf16.mxu0 0
    %111 = vmatpush1.bf16.msra.mxu0 0
    %112 = vmatprep.subr.bf16.mxu0 0
    %113 = vmatpush1.bf16.msra.mxu0 0
    %114 = vmatprep.subr.bf16.mxu0 0
    %115 = vmatpush1.bf16.msra.mxu0 0
    %116 = vmatprep.subr.bf16.mxu0 0
    %117 = vmatpush1.bf16.msra.mxu0 0
    %118 = vmatprep.subr.bf16.mxu0 0
    %119 = vmatpush1.bf16.msra.mxu0 0
    %120 = vmatprep.mubr.bf16.mxu0 0
    %121 = vmatmul.mubr.bf16.gmra.mrb[0].mxu0 %v83
    %v122 = vpop.f32.mrb[0].mxu0
    %v123 = vadd.f32 %v61, %v122
    %v124 = vpop.f32.mrb[0].mxu0
    %v125 = vpop.f32.mrb[0].mxu0
    %v126 = vadd.f32 %v61, %v125
    %v127 = vpop.f32.mrb[0].mxu0
    %128 = vmatprep.mubr.bf16.mxu0 0
    %129 = vmatmul.mubr.bf16.gmra.mrb[0].mxu0 %v86
    %v130 = vpop.f32.mrb[0].mxu0
    %v131 = vadd.f32 %v61, %v130
    %v132 = vpop.f32.mrb[0].mxu0
    %v133 = vpop.f32.mrb[0].mxu0
    %v134 = vadd.f32 %v61, %v133
    %v135 = vpop.f32.mrb[0].mxu0
    %136 = vdwg.mxu0
    %v137 = vpack.c.bf16 %v126, %v123
    %v138 = vpack.c.bf16 %v134, %v131
    %v141 = vunpack.c.l.b16 %v137
    %v142 = vunpack.c.h.b16 %v137
    %v143 = vunpack.c.l.b16 %v138
    %v144 = vunpack.c.h.b16 %v138
    %v145 = vpack.c.b16 %v141, %v141
    %v146 = vpack.c.b16 %v142, %v142
    %v147 = vpack.c.b16 %v143, %v143
    %v148 = vpack.c.b16 %v144, %v144
    %vm153 = vcmask 781312
    %154 = vst.msk [vmem:[#allocation7] sm:$0xf] %vm153, %v145
    %155 = vst.msk [vmem:[#allocation7 + $0x4] sm:$0xf] %vm153, %v146
    %156 = vst.msk [vmem:[#allocation7 + $0x8] sm:$0xf] %vm153, %v147
    %157 = vst.msk [vmem:[#allocation7 + $0xc] sm:$0xf] %vm153, %v148
    // Predicated region
    $region22: #{tpu_custom_call.1} parent=1 // pred_check
      _
    $region23: #{tpu_custom_call.1} parent=1 // pred_check_branch
      %159 = sbr.rel (0) target = $region25
    $region24: #{tpu_custom_call.1} parent=1 // pred_region
      %s161 = ssub.s32 256, 256
      %162 = vsyncadd [#allocation4], %s161
      %s163 = sshll.u32 [#allocation7], 4
      %s164 = int_to_ptr.vmem [resolvable:$true] %s163
      %169 = dma.vmem_to_hbm [thread:$0]  %s164, 256, %s3, [#allocation4], 64, 64, 4
    $region25: #{tpu_custom_call.1} parent=1 // pred_fallthru
      _
    // Predicated region
    $region26: #{tpu_custom_call.1} parent=1 // pred_check
      _
    $region27: #{tpu_custom_call.1} parent=1 // pred_check_branch
      %171 = sbr.rel (0) target = $region29
    $region28: #{tpu_custom_call.1} parent=1 // pred_region
      %172 = dma.done [#allocation4], 256
    $region29: #{tpu_custom_call.1} parent=1 // pred_fallthru
      _
    %173 = vsyncpa [#allocation3], 1
    %174 = vsyncpa [#allocation6], 1
    %175 = vsyncpa [#allocation4], 1

</llo_original>
